<compile_context>
chip_gen: v7x
topology: tpu7x:2x2x1
jax: 0.10.0
libtpu: 0.0.40
codegen_flags: <defaults>
</compile_context>

<pallas_src>
import jax
import jax.numpy as jnp
from jax.experimental import pallas as pl
from jax.experimental.pallas import tpu as pltpu


_LANE = 128
_VMEM_LIMIT = 48 * 1024 * 1024  # explicit scoped-VMEM budget (> v5e/v6e defaults)


def _round_up(x, m):
    return ((x + m - 1) // m) * m


def _pad2d(x, rows, cols, dtype):
    r, c = x.shape
    out = jnp.zeros((rows, cols), dtype=dtype)
    return out.at[:r, :c].set(x.astype(dtype))


# --------------------------------------------------------------------------
# One SAGEConv (mean aggregator) layer, tiled over rows of A (parallel) and
# the contraction dim of A (arbitrary, reduction axis last in the grid).
# --------------------------------------------------------------------------
def _sage_layer_kernel(a_ref, hk_ref, hi_ref, w_ref, b_ref, out_ref, acc_ref):
    k = pl.program_id(1)

    @pl.when(k == 0)
    def _():
        acc_ref[...] = jnp.zeros_like(acc_ref)

    # Neighbor aggregation: accumulate (A row-tile @ h K-tile) in f32.
    acc_ref[...] += jnp.dot(a_ref[...], hk_ref[...],
                            preferred_element_type=jnp.float32)

    @pl.when(k == pl.num_programs(1) - 1)
    def _():
        neigh = acc_ref[...].astype(jnp.bfloat16)
        # Fused self+neighbor matmul: single MXU dot with doubled K.
        cat = jnp.concatenate([hi_ref[...], neigh], axis=1)          # [tm, 2F]
        z = jnp.dot(cat, w_ref[...],
                    preferred_element_type=jnp.float32) + b_ref[...]
        out_ref[...] = jnp.maximum(z, 0.0).astype(out_ref.dtype)     # relu


def _sage_layer(a, h, w_cat, b, *, tm, tk):
    n_pad = a.shape[0]
    f = h.shape[1]
    hdim = w_cat.shape[1]
    grid = (n_pad // tm, n_pad // tk)

    flops = 2 * n_pad * n_pad * f + 2 * n_pad * (2 * f) * hdim
    bytes_accessed = (a.size * 2 + 2 * h.size * 2 + w_cat.size * 2
                      + b.size * 4 + n_pad * hdim * 2)

    return pl.pallas_call(
        _sage_layer_kernel,
        out_shape=jax.ShapeDtypeStruct((n_pad, hdim), jnp.bfloat16),
        grid_spec=pltpu.PrefetchScalarGridSpec(
            num_scalar_prefetch=0,
            grid=grid,
            in_specs=[
                pl.BlockSpec((tm, tk), lambda i, k: (i, k)),      # A tile
                pl.BlockSpec((tk, f), lambda i, k: (k, 0)),       # h rows (neighbor K-tile)
                pl.BlockSpec((tm, f), lambda i, k: (i, 0)),       # h rows (self term)
                pl.BlockSpec((2 * f, hdim), lambda i, k: (0, 0)), # fused [Ws^T; Wn^T]
                pl.BlockSpec((1, hdim), lambda i, k: (0, 0)),     # bias
            ],
            out_specs=pl.BlockSpec((tm, hdim), lambda i, k: (i, 0)),
            scratch_shapes=[pltpu.VMEM((tm, f), jnp.float32)],
        ),
        compiler_params=pltpu.CompilerParams(
            dimension_semantics=("parallel", "arbitrary"),
            vmem_limit_bytes=_VMEM_LIMIT,
        ),
        cost_estimate=pl.CostEstimate(flops=flops, transcendentals=0,
                                      bytes_accessed=bytes_accessed),
    )(a, h, h, w_cat, b)


# --------------------------------------------------------------------------
# Readout head: AvgPooling + fc1 + ELU + fc2 + log_softmax(dim=0).
# Tiny ([G, 128]-sized) -> single gridless kernel, weights pre-transposed.
# --------------------------------------------------------------------------
def _head_kernel(pool_ref, h_ref, w1_ref, b1_ref, w2_ref, b2_ref, out_ref):
    # AvgPooling: per-graph mean of node features (pool is the mean matrix).
    hg = jnp.dot(pool_ref[...], h_ref[...], preferred_element_type=jnp.float32)

    # fc1 + ELU (exp only on the non-positive branch; avoids exp overflow).
    z1 = jnp.dot(hg, w1_ref[...], preferred_element_type=jnp.float32) + b1_ref[...]
    z1 = jnp.where(z1 > 0.0, z1, jnp.exp(jnp.minimum(z1, 0.0)) - 1.0)

    # fc2
    z2 = jnp.dot(z1, w2_ref[...], preferred_element_type=jnp.float32) + b2_ref[...]

    # log_softmax over dim=0 (graph axis), per class column — as in the module.
    m = jnp.max(z2, axis=0, keepdims=True)
    lse = jnp.log(jnp.sum(jnp.exp(z2 - m), axis=0, keepdims=True)) + m
    out_ref[...] = z2 - lse


# --------------------------------------------------------------------------
# Full forward.
# --------------------------------------------------------------------------
def sage_dgl_forward(a_norm, h, pool, params):
    """params = (w0s, w0n, b0, ws, wn, bs, w1, b1, w2, b2) in PyTorch layout."""
    w0s, w0n, b0, ws, wn, bs, w1, b1, w2, b2 = params
    n = a_norm.shape[0]
    g = pool.shape[0]
    in_feats = h.shape[1]
    n_hidden = w1.shape[0]
    n_classes = w2.shape[0]

    n_pad = _round_up(n, _LANE)
    f_pad = _round_up(in_feats, _LANE)
    h_pad = _round_up(n_hidden, _LANE)
    c_pad = _round_up(n_classes, _LANE)

    tm = 256 if n_pad % 256 == 0 else 128
    tk = 512 if n_pad % 512 == 0 else (256 if n_pad % 256 == 0 else 128)

    # bf16 MXU operands (f32 accumulation happens inside the kernels).
    a_p = _pad2d(a_norm, n_pad, n_pad, jnp.bfloat16)
    h_p = _pad2d(h, n_pad, f_pad, jnp.bfloat16)
    pool_p = _pad2d(pool, g, n_pad, jnp.bfloat16)

    def fuse(w_self, w_neigh, bias, fin_pad):
        # Pre-transpose to [in, out], zero-pad, and stack self/neigh along K.
        ws_t = _pad2d(w_self.T, fin_pad, h_pad, jnp.bfloat16)
        wn_t = _pad2d(w_neigh.T, fin_pad, h_pad, jnp.bfloat16)
        w_cat = jnp.concatenate([ws_t, wn_t], axis=0)            # [2*fin_pad, h_pad]
        b_p = _pad2d(bias.reshape(1, -1), 1, h_pad, jnp.float32)
        return w_cat, b_p

    layer_params = [fuse(w0s, w0n, b0, f_pad)]
    for i in range(3):
        layer_params.append(fuse(ws[i], wn[i], bs[i], h_pad))

    x = h_p
    for w_cat, b_p in layer_params:
        x = _sage_layer(a_p, x, w_cat, b_p, tm=tm, tk=tk)

    # Head weights stay f32 (tiny matmuls; keeps final log-probs precise).
    w1_t = _pad2d(w1.T, h_pad, h_pad, jnp.float32)
    b1_p = _pad2d(b1.reshape(1, -1), 1, h_pad, jnp.float32)
    w2_t = _pad2d(w2.T, h_pad, c_pad, jnp.float32)
    b2_p = _pad2d(b2.reshape(1, -1), 1, c_pad, jnp.float32)

    vmem = pl.BlockSpec(memory_space=pltpu.MemorySpace.VMEM)
    out = pl.pallas_call(
        _head_kernel,
        out_shape=jax.ShapeDtypeStruct((g, c_pad), jnp.float32),
        in_specs=[vmem] * 6,
        out_specs=vmem,
        compiler_params=pltpu.CompilerParams(vmem_limit_bytes=_VMEM_LIMIT),
    )(pool_p, x, w1_t, b1_p, w2_t, b2_p)

    # Slice away class padding.
    return out[:, :n_classes]


# --------------------------------------------------------------------------
# Pure-JAX f32 reference of the same forward.
# --------------------------------------------------------------------------
def reference_forward(a_norm, h, pool, params):
    w0s, w0n, b0, ws, wn, bs, w1, b1, w2, b2 = params

    def layer(h, wsf, wng, b):
        return jnp.maximum(h @ wsf.T + (a_norm @ h) @ wng.T + b, 0.0)

    h = layer(h, w0s, w0n, b0)
    for i in range(3):
        h = layer(h, ws[i], wn[i], bs[i])
    hg = pool @ h
    z1 = hg @ w1.T + b1
    z1 = jnp.where(z1 > 0, z1, jnp.exp(jnp.minimum(z1, 0.0)) - 1.0)
    z2 = z1 @ w2.T + b2
    return jax.nn.log_softmax(z2, axis=0)


if __name__ == "__main__":
    # Small synthetic problem: 2 graphs x 8 nodes = 16 nodes total.
    num_graphs, nodes_per_graph = 2, 8
    N = num_graphs * nodes_per_graph
    in_feats, n_hidden, n_classes = 16, 32, 8

    key = jax.random.PRNGKey(0)
    k_feat, k_adj, *k_w = jax.random.split(key, 12)

    # Node features.
    h0 = jax.random.normal(k_feat, (N, in_feats), dtype=jnp.float32)

    # Block-diagonal random adjacency (two disjoint graphs), row-normalized
    # (DGL "mean" aggregator).
    adj = (jax.random.uniform(k_adj, (N, N)) < 0.4).astype(jnp.float32)
    block_mask = jnp.kron(jnp.eye(num_graphs, dtype=jnp.float32),
                          jnp.ones((nodes_per_graph, nodes_per_graph), jnp.float32))
    adj = adj * block_mask * (1.0 - jnp.eye(N, dtype=jnp.float32))
    deg = jnp.maximum(adj.sum(axis=1, keepdims=True), 1.0)
    a_norm = adj / deg                                            # [N, N]

    # AvgPooling readout matrix: [G, N], each row averages its graph's nodes.
    pool = jnp.kron(jnp.eye(num_graphs, dtype=jnp.float32),
                    jnp.ones((1, nodes_per_graph), jnp.float32)) / nodes_per_graph

    # Deterministic synthetic parameters (PyTorch [out, in] layout).
    def winit(k, shape, scale=0.1):
        return (scale * jax.random.normal(k, shape)).astype(jnp.float32)

    w0s = winit(k_w[0], (n_hidden, in_feats))          # SAGE layer 0 fc_self
    w0n = winit(k_w[1], (n_hidden, in_feats))          # SAGE layer 0 fc_neigh
    b0 = winit(k_w[2], (1, n_hidden))
    ws = winit(k_w[3], (3, n_hidden, n_hidden))        # SAGE layers 1-3 fc_self
    wn = winit(k_w[4], (3, n_hidden, n_hidden))        # SAGE layers 1-3 fc_neigh
    bs = winit(k_w[5], (3, 1, n_hidden))
    w1 = winit(k_w[6], (n_hidden, n_hidden))           # fc1
    b1 = winit(k_w[7], (1, n_hidden))
    w2 = winit(k_w[8], (n_classes, n_hidden))          # fc2
    b2 = winit(k_w[9], (1, n_classes))

    params = (w0s, w0n, b0, ws, wn, bs, w1, b1, w2, b2)

    out = jax.jit(sage_dgl_forward)(a_norm, h0, pool, params)
    out = jax.block_until_ready(out)

    ref = reference_forward(a_norm, h0, pool, params)
    assert out.shape == (num_graphs, n_classes)
    # bf16 MXU inputs with f32 accumulation -> compare vs f32 reference loosely.
    assert jnp.allclose(out, ref, atol=2e-2, rtol=2e-2), "mismatch vs pure-JAX reference"

    # TODO(synk): self.dropout and self.readout are defined in __init__ but never
    # used in the original forward, so they are intentionally not implemented.
    print("KERNEL_OK")
</pallas_src>

<mosaic_0001>
module attributes {stable_mosaic.version = 11 : i64} {
  func.func @_sage_layer_kernel(%arg0: i32, %arg1: i32, %arg2: memref<128x128xbf16, #tpu.memory_space<vmem>>, %arg3: memref<128x128xbf16, #tpu.memory_space<vmem>>, %arg4: memref<128x128xbf16, #tpu.memory_space<vmem>>, %arg5: memref<256x128xbf16, #tpu.memory_space<vmem>>, %arg6: memref<1x128xf32, #tpu.memory_space<vmem>>, %arg7: memref<128x128xbf16, #tpu.memory_space<vmem>>, %arg8: memref<128x128xf32, #tpu.memory_space<vmem>>) attributes {dimension_semantics = [#tpu.dimension_semantics<parallel>, #tpu.dimension_semantics<arbitrary>], iteration_bounds = array<i64: 1, 1>, scalar_prefetch = 0 : i64, scratch_operands = 1 : i64, tpu.core_type = #tpu.core_type<tc>, window_params = [{transform_indices = @transform_0, window_bounds = array<i64: 128, 128>}, {transform_indices = @transform_1, window_bounds = array<i64: 128, 128>}, {transform_indices = @transform_2, window_bounds = array<i64: 128, 128>}, {pipeline_mode = #tpu.pipeline_mode<synchronous>, transform_indices = @transform_3, window_bounds = array<i64: 256, 128>}, {pipeline_mode = #tpu.pipeline_mode<synchronous>, transform_indices = @transform_4, window_bounds = array<i64: 1, 128>}, {transform_indices = @transform_5, window_bounds = array<i64: 128, 128>}]} {
    %c0_i32 = arith.constant 0 : i32
    %0 = arith.cmpi eq, %arg1, %c0_i32 : i32
    %1 = arith.extui %0 : i1 to i32
    %c0_i32_0 = arith.constant 0 : i32
    %2 = arith.cmpi ne, %1, %c0_i32_0 : i32
    scf.if %2 {
      %cst_10 = arith.constant 0.000000e+00 : f32
      %12 = vector.broadcast %cst_10 : f32 to vector<128x128xf32>
      %c0_11 = arith.constant 0 : index
      %c0_12 = arith.constant 0 : index
      %13 = vector.load %arg8[%c0_11, %c0_12] : memref<128x128xf32, #tpu.memory_space<vmem>>, vector<128x128xf32>
      tpu.vector_store %arg8[%c0_11, %c0_12], %12 {strides = array<i32>} : memref<128x128xf32, #tpu.memory_space<vmem>>, vector<128x128xf32>,
    } else {
    }
    %c0 = arith.constant 0 : index
    %c0_1 = arith.constant 0 : index
    %3 = vector.load %arg8[%c0, %c0_1] : memref<128x128xf32, #tpu.memory_space<vmem>>, vector<128x128xf32>
    %c0_2 = arith.constant 0 : index
    %c0_3 = arith.constant 0 : index
    %4 = vector.load %arg2[%c0_2, %c0_3] : memref<128x128xbf16, #tpu.memory_space<vmem>>, vector<128x128xbf16>
    %c0_4 = arith.constant 0 : index
    %c0_5 = arith.constant 0 : index
    %5 = vector.load %arg3[%c0_4, %c0_5] : memref<128x128xbf16, #tpu.memory_space<vmem>>, vector<128x128xbf16>
    %cst = arith.constant dense<0.000000e+00> : vector<128x128xf32>
    %6 = tpu.matmul %4, %5, %cst {dimension_numbers = #tpu.dot_dimension_numbers<[1], [0], [0], [1], [0, 0, 1, 1], [], []>} : vector<128x128xbf16>, vector<128x128xbf16>, vector<128x128xf32> -> vector<128x128xf32>
    %7 = arith.addf %3, %6 : vector<128x128xf32>
    %c0_6 = arith.constant 0 : index
    %c0_7 = arith.constant 0 : index
    %8 = vector.load %arg8[%c0_6, %c0_7] : memref<128x128xf32, #tpu.memory_space<vmem>>, vector<128x128xf32>
    tpu.vector_store %arg8[%c0_6, %c0_7], %7 {strides = array<i32>} : memref<128x128xf32, #tpu.memory_space<vmem>>, vector<128x128xf32>,
    %c0_i32_8 = arith.constant 0 : i32
    %9 = arith.cmpi eq, %arg1, %c0_i32_8 : i32
    %10 = arith.extui %9 : i1 to i32
    %c0_i32_9 = arith.constant 0 : i32
    %11 = arith.cmpi ne, %10, %c0_i32_9 : i32
    scf.if %11 {
      %c0_10 = arith.constant 0 : index
      %c0_11 = arith.constant 0 : index
      %12 = vector.load %arg8[%c0_10, %c0_11] : memref<128x128xf32, #tpu.memory_space<vmem>>, vector<128x128xf32>
      %13 = arith.truncf %12 : vector<128x128xf32> to vector<128x128xbf16>
      %c0_12 = arith.constant 0 : index
      %c0_13 = arith.constant 0 : index
      %14 = vector.load %arg4[%c0_12, %c0_13] : memref<128x128xbf16, #tpu.memory_space<vmem>>, vector<128x128xbf16>
      %15 = tpu.concatenate %14, %13 in 1 : vector<128x128xbf16>, vector<128x128xbf16> -> vector<128x256xbf16>
      %c0_14 = arith.constant 0 : index
      %c0_15 = arith.constant 0 : index
      %16 = vector.load %arg5[%c0_14, %c0_15] : memref<256x128xbf16, #tpu.memory_space<vmem>>, vector<256x128xbf16>
      %cst_16 = arith.constant dense<0.000000e+00> : vector<128x128xf32>
      %17 = tpu.matmul %15, %16, %cst_16 {dimension_numbers = #tpu.dot_dimension_numbers<[1], [0], [0], [1], [0, 0, 1, 1], [], []>} : vector<128x256xbf16>, vector<256x128xbf16>, vector<128x128xf32> -> vector<128x128xf32>
      %c0_17 = arith.constant 0 : index
      %c0_18 = arith.constant 0 : index
      %18 = vector.load %arg6[%c0_17, %c0_18] : memref<1x128xf32, #tpu.memory_space<vmem>>, vector<1x128xf32>
      %19 = vector.broadcast %18 : vector<1x128xf32> to vector<128x128xf32>
      %20 = arith.addf %17, %19 : vector<128x128xf32>
      %cst_19 = arith.constant 0.000000e+00 : f32
      %21 = vector.broadcast %cst_19 : f32 to vector<128x128xf32>
      %22 = arith.maximumf %20, %21 : vector<128x128xf32>
      %23 = arith.truncf %22 : vector<128x128xf32> to vector<128x128xbf16>
      %c0_20 = arith.constant 0 : index
      %c0_21 = arith.constant 0 : index
      %24 = vector.load %arg7[%c0_20, %c0_21] : memref<128x128xbf16, #tpu.memory_space<vmem>>, vector<128x128xbf16>
      tpu.vector_store %arg7[%c0_20, %c0_21], %23 {strides = array<i32>} : memref<128x128xbf16, #tpu.memory_space<vmem>>, vector<128x128xbf16>,
    } else {
    }
    return
  }
  func.func @transform_0(%arg0: i32, %arg1: i32) -> (i32, i32) {
    %c0_i32 = arith.constant 0 : i32
    return %arg0, %arg1 : i32, i32
  }
  func.func @transform_1(%arg0: i32, %arg1: i32) -> (i32, i32) {
    %c0_i32 = arith.constant 0 : i32
    %c0_i32_0 = arith.constant 0 : i32
    return %arg1, %c0_i32 : i32, i32
  }
  func.func @transform_2(%arg0: i32, %arg1: i32) -> (i32, i32) {
    %c0_i32 = arith.constant 0 : i32
    %c0_i32_0 = arith.constant 0 : i32
    return %arg0, %c0_i32 : i32, i32
  }
  func.func @transform_3(%arg0: i32, %arg1: i32) -> (i32, i32) {
    %c0_i32 = arith.constant 0 : i32
    %c0_i32_0 = arith.constant 0 : i32
    %c0_i32_1 = arith.constant 0 : i32
    return %c0_i32, %c0_i32_0 : i32, i32
  }
  func.func @transform_4(%arg0: i32, %arg1: i32) -> (i32, i32) {
    %c0_i32 = arith.constant 0 : i32
    %c0_i32_0 = arith.constant 0 : i32
    %c0_i32_1 = arith.constant 0 : i32
    return %c0_i32, %c0_i32_0 : i32, i32
  }
  func.func @transform_5(%arg0: i32, %arg1: i32) -> (i32, i32) {
    %c0_i32 = arith.constant 0 : i32
    %c0_i32_0 = arith.constant 0 : i32
    return %arg0, %c0_i32 : i32, i32
  }
}

module attributes {stable_mosaic.version = 11 : i64} {
  func.func @_head_kernel(%arg0: memref<2x128xbf16, #tpu.memory_space<vmem>>, %arg1: memref<128x128xbf16, #tpu.memory_space<vmem>>, %arg2: memref<128x128xf32, #tpu.memory_space<vmem>>, %arg3: memref<1x128xf32, #tpu.memory_space<vmem>>, %arg4: memref<128x128xf32, #tpu.memory_space<vmem>>, %arg5: memref<1x128xf32, #tpu.memory_space<vmem>>, %arg6: memref<2x128xf32, #tpu.memory_space<vmem>>) attributes {dimension_semantics = [], scalar_prefetch = 0 : i64, scratch_operands = 0 : i64, tpu.core_type = #tpu.core_type<tc>} {
    %c0 = arith.constant 0 : index
    %c0_0 = arith.constant 0 : index
    %0 = vector.load %arg0[%c0, %c0_0] : memref<2x128xbf16, #tpu.memory_space<vmem>>, vector<2x128xbf16>
    %c0_1 = arith.constant 0 : index
    %c0_2 = arith.constant 0 : index
    %1 = vector.load %arg1[%c0_1, %c0_2] : memref<128x128xbf16, #tpu.memory_space<vmem>>, vector<128x128xbf16>
    %cst = arith.constant dense<0.000000e+00> : vector<2x128xf32>
    %2 = tpu.matmul %0, %1, %cst {dimension_numbers = #tpu.dot_dimension_numbers<[1], [0], [0], [1], [0, 0, 1, 1], [], []>} : vector<2x128xbf16>, vector<128x128xbf16>, vector<2x128xf32> -> vector<2x128xf32>
    %c0_3 = arith.constant 0 : index
    %c0_4 = arith.constant 0 : index
    %3 = vector.load %arg2[%c0_3, %c0_4] : memref<128x128xf32, #tpu.memory_space<vmem>>, vector<128x128xf32>
    %cst_5 = arith.constant dense<0.000000e+00> : vector<2x128xf32>
    %4 = tpu.matmul %2, %3, %cst_5 {dimension_numbers = #tpu.dot_dimension_numbers<[1], [0], [0], [1], [0, 0, 1, 1], [], []>} : vector<2x128xf32>, vector<128x128xf32>, vector<2x128xf32> -> vector<2x128xf32>
    %c0_6 = arith.constant 0 : index
    %c0_7 = arith.constant 0 : index
    %5 = vector.load %arg3[%c0_6, %c0_7] : memref<1x128xf32, #tpu.memory_space<vmem>>, vector<1x128xf32>
    %6 = vector.broadcast %5 : vector<1x128xf32> to vector<2x128xf32>
    %7 = arith.addf %4, %6 : vector<2x128xf32>
    %cst_8 = arith.constant 0.000000e+00 : f32
    %8 = vector.broadcast %cst_8 : f32 to vector<2x128xf32>
    %9 = arith.cmpf ogt, %7, %8 : vector<2x128xf32>
    %cst_9 = arith.constant 0.000000e+00 : f32
    %10 = vector.broadcast %cst_9 : f32 to vector<2x128xf32>
    %11 = arith.minimumf %7, %10 : vector<2x128xf32>
    %12 = math.exp %11 : vector<2x128xf32>
    %cst_10 = arith.constant 1.000000e+00 : f32
    %13 = vector.broadcast %cst_10 : f32 to vector<2x128xf32>
    %14 = arith.subf %12, %13 : vector<2x128xf32>
    %15 = arith.select %9, %7, %14 : vector<2x128xi1>, vector<2x128xf32>
    %c0_11 = arith.constant 0 : index
    %c0_12 = arith.constant 0 : index
    %16 = vector.load %arg4[%c0_11, %c0_12] : memref<128x128xf32, #tpu.memory_space<vmem>>, vector<128x128xf32>
    %cst_13 = arith.constant dense<0.000000e+00> : vector<2x128xf32>
    %17 = tpu.matmul %15, %16, %cst_13 {dimension_numbers = #tpu.dot_dimension_numbers<[1], [0], [0], [1], [0, 0, 1, 1], [], []>} : vector<2x128xf32>, vector<128x128xf32>, vector<2x128xf32> -> vector<2x128xf32>
    %c0_14 = arith.constant 0 : index
    %c0_15 = arith.constant 0 : index
    %18 = vector.load %arg5[%c0_14, %c0_15] : memref<1x128xf32, #tpu.memory_space<vmem>>, vector<1x128xf32>
    %19 = vector.broadcast %18 : vector<1x128xf32> to vector<2x128xf32>
    %20 = arith.addf %17, %19 : vector<2x128xf32>
    %cst_16 = arith.constant dense<0xFF800000> : vector<128xf32>
    %21 = vector.multi_reduction <maximumf>, %20, %cst_16 [0] : vector<2x128xf32> to vector<128xf32>
    %22 = vector.shape_cast %21 : vector<128xf32> to vector<1x128xf32>
    %23 = vector.broadcast %22 : vector<1x128xf32> to vector<2x128xf32>
    %24 = arith.subf %20, %23 : vector<2x128xf32>
    %25 = math.exp %24 : vector<2x128xf32>
    %cst_17 = arith.constant dense<0.000000e+00> : vector<128xf32>
    %26 = vector.multi_reduction <add>, %25, %cst_17 [0] : vector<2x128xf32> to vector<128xf32>
    %27 = vector.shape_cast %26 : vector<128xf32> to vector<1x128xf32>
    %28 = math.log %27 : vector<1x128xf32>
    %29 = arith.addf %28, %22 : vector<1x128xf32>
    %30 = vector.broadcast %29 : vector<1x128xf32> to vector<2x128xf32>
    %31 = arith.subf %20, %30 : vector<2x128xf32>
    %c0_18 = arith.constant 0 : index
    %c0_19 = arith.constant 0 : index
    %32 = vector.load %arg6[%c0_18, %c0_19] : memref<2x128xf32, #tpu.memory_space<vmem>>, vector<2x128xf32>
    tpu.vector_store %arg6[%c0_18, %c0_19], %31 {strides = array<i32>} : memref<2x128xf32, #tpu.memory_space<vmem>>, vector<2x128xf32>,
    return
  }
}

</mosaic_0001>

<llo_original>
// kernel: sage_dgl_forward.9
$region0: #{sage_dgl_forward.9}
  #allocation0 [shape = 'u32[]', space=smem, size = 0x4, offset = 0x4, fixed_abs, tag = 'smem constant byte address 0x4 - core index']
  #allocation1 [shape = 'u32[144,128]{1,0:T(1,128)}', space=vmem, size = 0x12000, scoped, tag = 'internal scratch']
  %s0 = inlined_call_operand.vmem [shape: bf16[2,128], index: 0, kind: input, shape index: {}]
  %s1 = inlined_call_operand.vmem [shape: bf16[128,128], index: 1, kind: input, shape index: {}]
  %s2 = inlined_call_operand.vmem [shape: f32[128,128], index: 2, kind: input, shape index: {}]
  %s3 = inlined_call_operand.vmem [shape: f32[1,128], index: 3, kind: input, shape index: {}]
  %s4 = inlined_call_operand.vmem [shape: f32[128,128], index: 4, kind: input, shape index: {}]
  %s5 = inlined_call_operand.vmem [shape: f32[1,128], index: 5, kind: input, shape index: {}]
  %s6 = inlined_call_operand.hbm [shape: f32[2,128], index: 6, kind: output, shape index: {}]
  %s7 = sld [smem:[#allocation0]]
  $region34: #{sage_dgl_forward.9} parent=0
    _
  %s9 = ssub.s32 1, %s7
  %s10 = scalar_select 0, %s9, %s7
  $region1: #{sage_dgl_forward.9} parent=0
    #allocation2 [shape = 'u8[1024]{0}', space=vmem, size = 0x400, scoped, tag = 'output window, operand 0, single buffered']
    #allocation3 [shape = 's32[1]{0}', space=sflag, size = 0x4, scoped, tag = 'scoped memory for sage_dgl_forward.9']
    %11 = vsyncpa [#allocation3], 0
    // Predicated region
    $region2: #{sage_dgl_forward.9} parent=1 // pred_check
      _
    $region3: #{sage_dgl_forward.9} parent=1 // pred_check_branch
      %13 = sbr.rel (0) target = $region5
    $region4: #{sage_dgl_forward.9} parent=1 // pred_region
      _
    $region5: #{sage_dgl_forward.9} parent=1 // pred_fallthru
      _
    // Predicated region
    $region6: #{sage_dgl_forward.9} parent=1 // pred_check
      _
    $region7: #{sage_dgl_forward.9} parent=1 // pred_check_branch
      %15 = sbr.rel (0) target = $region9
    $region8: #{sage_dgl_forward.9} parent=1 // pred_region
      _
    $region9: #{sage_dgl_forward.9} parent=1 // pred_fallthru
      _
    // Predicated region
    $region10: #{sage_dgl_forward.9} parent=1 // pred_check
      _
    $region11: #{sage_dgl_forward.9} parent=1 // pred_check_branch
      %17 = sbr.rel (0) target = $region13
    $region12: #{sage_dgl_forward.9} parent=1 // pred_region
      _
    $region13: #{sage_dgl_forward.9} parent=1 // pred_fallthru
      _
    // Predicated region
    $region14: #{sage_dgl_forward.9} parent=1 // pred_check
      _
    $region15: #{sage_dgl_forward.9} parent=1 // pred_check_branch
      %19 = sbr.rel (0) target = $region17
    $region16: #{sage_dgl_forward.9} parent=1 // pred_region
      _
    $region17: #{sage_dgl_forward.9} parent=1 // pred_fallthru
      _
    // Predicated region
    $region18: #{sage_dgl_forward.9} parent=1 // pred_check
      _
    $region19: #{sage_dgl_forward.9} parent=1 // pred_check_branch
      %21 = sbr.rel (0) target = $region21
    $region20: #{sage_dgl_forward.9} parent=1 // pred_region
      _
    $region21: #{sage_dgl_forward.9} parent=1 // pred_fallthru
      _
    // Predicated region
    $region22: #{sage_dgl_forward.9} parent=1 // pred_check
      _
    $region23: #{sage_dgl_forward.9} parent=1 // pred_check_branch
      %23 = sbr.rel (0) target = $region25
    $region24: #{sage_dgl_forward.9} parent=1 // pred_region
      _
    $region25: #{sage_dgl_forward.9} parent=1 // pred_fallthru
      _
    %v25 = vld [vmem:[%s0] sm:$0x1]
    %v26 = vld [vmem:[%s1] sm:$0xf]
    %v27 = vld [vmem:[%s1 + $0x4] sm:$0xf]
    %v28 = vld [vmem:[%s1 + $0x8] sm:$0xf]
    %v29 = vld [vmem:[%s1 + $0xc] sm:$0xf]
    %v30 = vld [vmem:[%s1 + $0x10] sm:$0xf]
    %v31 = vld [vmem:[%s1 + $0x14] sm:$0xf]
    %v32 = vld [vmem:[%s1 + $0x18] sm:$0xf]
    %v33 = vld [vmem:[%s1 + $0x1c] sm:$0xf]
    %v34 = vld [vmem:[%s1 + $0x20] sm:$0xf]
    %v35 = vld [vmem:[%s1 + $0x24] sm:$0xf]
    %v36 = vld [vmem:[%s1 + $0x28] sm:$0xf]
    %v37 = vld [vmem:[%s1 + $0x2c] sm:$0xf]
    %v38 = vld [vmem:[%s1 + $0x30] sm:$0xf]
    %v39 = vld [vmem:[%s1 + $0x34] sm:$0xf]
    %v40 = vld [vmem:[%s1 + $0x38] sm:$0xf]
    %v41 = vld [vmem:[%s1 + $0x3c] sm:$0xf]
    %v58 = vunpack.c.l.b16 %v26
    %v59 = vunpack.c.l.b16 %v27
    %v60 = vunpack.c.l.b16 %v28
    %v61 = vunpack.c.l.b16 %v29
    %v62 = vunpack.c.l.b16 %v30
    %v63 = vunpack.c.l.b16 %v31
    %v64 = vunpack.c.l.b16 %v32
    %v65 = vunpack.c.l.b16 %v33
    %v66 = vunpack.c.l.b16 %v34
    %v67 = vunpack.c.l.b16 %v35
    %v68 = vunpack.c.l.b16 %v36
    %v69 = vunpack.c.l.b16 %v37
    %v70 = vunpack.c.l.b16 %v38
    %v71 = vunpack.c.l.b16 %v39
    %v72 = vunpack.c.l.b16 %v40
    %v73 = vunpack.c.l.b16 %v41
    %v74 = vpack.c.b16 %v59, %v58
    %v75 = vpack.c.b16 %v61, %v60
    %v76 = vpack.c.b16 %v63, %v62
    %v77 = vpack.c.b16 %v65, %v64
    %v78 = vpack.c.b16 %v67, %v66
    %v79 = vpack.c.b16 %v69, %v68
    %v80 = vpack.c.b16 %v71, %v70
    %v81 = vpack.c.b16 %v73, %v72
    %90 = vmatprep.subr.bf16.mxu0 0
    %91 = vmatpush1.bf16.msra.mxu0 %v74
    %92 = vmatprep.subr.bf16.mxu0 0
    %93 = vmatpush1.bf16.msra.mxu0 %v75
    %94 = vmatprep.subr.bf16.mxu0 0
    %95 = vmatpush1.bf16.msra.mxu0 %v76
    %96 = vmatprep.subr.bf16.mxu0 0
    %97 = vmatpush1.bf16.msra.mxu0 %v77
    %98 = vmatprep.subr.bf16.mxu0 0
    %99 = vmatpush1.bf16.msra.mxu0 %v78
    %100 = vmatprep.subr.bf16.mxu0 0
    %101 = vmatpush1.bf16.msra.mxu0 %v79
    %102 = vmatprep.subr.bf16.mxu0 0
    %103 = vmatpush1.bf16.msra.mxu0 %v80
    %104 = vmatprep.subr.bf16.mxu0 0
    %105 = vmatpush1.bf16.msra.mxu0 %v81
    %106 = vmatprep.subr.bf16.mxu0 0
    %107 = vmatpush1.bf16.msra.mxu0 0
    %108 = vmatprep.subr.bf16.mxu0 0
    %109 = vmatpush1.bf16.msra.mxu0 0
    %110 = vmatprep.subr.bf16.mxu0 0
    %111 = vmatpush1.bf16.msra.mxu0 0
    %112 = vmatprep.subr.bf16.mxu0 0
    %113 = vmatpush1.bf16.msra.mxu0 0
    %114 = vmatprep.subr.bf16.mxu0 0
    %115 = vmatpush1.bf16.msra.mxu0 0
    %116 = vmatprep.subr.bf16.mxu0 0
    %117 = vmatpush1.bf16.msra.mxu0 0
    %118 = vmatprep.subr.bf16.mxu0 0
    %119 = vmatpush1.bf16.msra.mxu0 0
    %120 = vmatprep.subr.bf16.mxu0 0
    %121 = vmatpush1.bf16.msra.mxu0 0
    %122 = vmatprep.mubr.bf16.mxu0 0
    %123 = vmatmul.mubr.bf16.gmra.mrb[0].mxu0 %v25
    %v124 = vpop.f32.mrb[0].mxu0
    %v125 = vadd.f32 0.0, %v124
    %v126 = vpop.f32.mrb[0].mxu0
    %v127 = vpop.f32.mrb[0].mxu0
    %v128 = vpop.f32.mrb[0].mxu0
    %129 = vdwg.mxu0
    %v130 = vld [vmem:[%s2] sm:$0xff]
    %v131 = vld [vmem:[%s2 + $0x8] sm:$0xff]
    %v132 = vld [vmem:[%s2 + $0x10] sm:$0xff]
    %v133 = vld [vmem:[%s2 + $0x18] sm:$0xff]
    %v134 = vld [vmem:[%s2 + $0x20] sm:$0xff]
    %v135 = vld [vmem:[%s2 + $0x28] sm:$0xff]
    %v136 = vld [vmem:[%s2 + $0x30] sm:$0xff]
    %v137 = vld [vmem:[%s2 + $0x38] sm:$0xff]
    %v138 = vld [vmem:[%s2 + $0x40] sm:$0xff]
    %v139 = vld [vmem:[%s2 + $0x48] sm:$0xff]
    %v140 = vld [vmem:[%s2 + $0x50] sm:$0xff]
    %v141 = vld [vmem:[%s2 + $0x58] sm:$0xff]
    %v142 = vld [vmem:[%s2 + $0x60] sm:$0xff]
    %v143 = vld [vmem:[%s2 + $0x68] sm:$0xff]
    %v144 = vld [vmem:[%s2 + $0x70] sm:$0xff]
    %v145 = vld [vmem:[%s2 + $0x78] sm:$0xff]
    %v146 = vld [vmem:[%s3] sm:$0x1]
    %v148 = vlaneseq
    %v149 = vshrl.u32 %v148, 7
    %v150 = vsub.s32 0, %v149
    %v151 = vrot.slane %v146, %v150
    %153 = vmatprep.subr.mxu0 0.0
    %154 = vmatpush1.msra.mxu0 %v130
    %155 = vmatprep.subr.mxu0 0.0
    %156 = vmatpush1.msra.mxu0 %v131
    %157 = vmatprep.subr.mxu0 0.0
    %158 = vmatpush1.msra.mxu0 %v132
    %159 = vmatprep.subr.mxu0 0.0
    %160 = vmatpush1.msra.mxu0 %v133
    %161 = vmatprep.subr.mxu0 0.0
    %162 = vmatpush1.msra.mxu0 %v134
    %163 = vmatprep.subr.mxu0 0.0
    %164 = vmatpush1.msra.mxu0 %v135
    %165 = vmatprep.subr.mxu0 0.0
    %166 = vmatpush1.msra.mxu0 %v136
    %167 = vmatprep.subr.mxu0 0.0
    %168 = vmatpush1.msra.mxu0 %v137
    %169 = vmatprep.subr.mxu0 0.0
    %170 = vmatpush1.msra.mxu0 %v138
    %171 = vmatprep.subr.mxu0 0.0
    %172 = vmatpush1.msra.mxu0 %v139
    %173 = vmatprep.subr.mxu0 0.0
    %174 = vmatpush1.msra.mxu0 %v140
    %175 = vmatprep.subr.mxu0 0.0
    %176 = vmatpush1.msra.mxu0 %v141
    %177 = vmatprep.subr.mxu0 0.0
    %178 = vmatpush1.msra.mxu0 %v142
    %179 = vmatprep.subr.mxu0 0.0
    %180 = vmatpush1.msra.mxu0 %v143
    %181 = vmatprep.subr.mxu0 0.0
    %182 = vmatpush1.msra.mxu0 %v144
    %183 = vmatprep.subr.mxu0 0.0
    %184 = vmatpush1.msra.mxu0 %v145
    %185 = vmatprep.subr.mxu0 0.0
    %186 = vmatpush1.msra.mxu0 0.0
    %187 = vmatprep.subr.mxu0 0.0
    %188 = vmatpush1.msra.mxu0 0.0
    %189 = vmatprep.subr.mxu0 0.0
    %190 = vmatpush1.msra.mxu0 0.0
    %191 = vmatprep.subr.mxu0 0.0
    %192 = vmatpush1.msra.mxu0 0.0
    %193 = vmatprep.subr.mxu0 0.0
    %194 = vmatpush1.msra.mxu0 0.0
    %195 = vmatprep.subr.mxu0 0.0
    %196 = vmatpush1.msra.mxu0 0.0
    %197 = vmatprep.subr.mxu0 0.0
    %198 = vmatpush1.msra.mxu0 0.0
    %199 = vmatprep.subr.mxu0 0.0
    %200 = vmatpush1.msra.mxu0 0.0
    %201 = vmatprep.subr.mxu0 0.0
    %202 = vmatpush1.msra.mxu0 0.0
    %203 = vmatprep.subr.mxu0 0.0
    %204 = vmatpush1.msra.mxu0 0.0
    %205 = vmatprep.subr.mxu0 0.0
    %206 = vmatpush1.msra.mxu0 0.0
    %207 = vmatprep.subr.mxu0 0.0
    %208 = vmatpush1.msra.mxu0 0.0
    %209 = vmatprep.subr.mxu0 0.0
    %210 = vmatpush1.msra.mxu0 0.0
    %211 = vmatprep.subr.mxu0 0.0
    %212 = vmatpush1.msra.mxu0 0.0
    %213 = vmatprep.subr.mxu0 0.0
    %214 = vmatpush1.msra.mxu0 0.0
    %215 = vmatprep.subr.mxu0 0.0
    %216 = vmatpush1.msra.mxu0 0.0
    %217 = vmatprep.mubr.f32.mxu0 0.0
    %218 = vmatmul.mubr.f32.gmra.mrb[0].mxu0 %v125
    %v219 = vpop.f32.mrb[0].mxu0
    %v220 = vadd.f32 %v151, %v219
    %v221 = vpop.f32.mrb[0].mxu0
    %222 = vdwg.mxu0
    %vm223 = vcmp.gt.f32.partialorder %v220, 0.0
    %v224 = vmin.f32 %v220, 0.0
    %v225 = vmul.f32 %v224, 1.442695
    %v226 = vpow.pop %v225
    %v227 = vsub.f32 %v226, 1.0
    %v228 = vsel %vm223, %v220, %v227
    %v229 = vld [vmem:[%s4] sm:$0xff]
    %v230 = vld [vmem:[%s4 + $0x8] sm:$0xff]
    %v231 = vld [vmem:[%s4 + $0x10] sm:$0xff]
    %v232 = vld [vmem:[%s4 + $0x18] sm:$0xff]
    %v233 = vld [vmem:[%s4 + $0x20] sm:$0xff]
    %v234 = vld [vmem:[%s4 + $0x28] sm:$0xff]
    %v235 = vld [vmem:[%s4 + $0x30] sm:$0xff]
    %v236 = vld [vmem:[%s4 + $0x38] sm:$0xff]
    %v237 = vld [vmem:[%s4 + $0x40] sm:$0xff]
    %v238 = vld [vmem:[%s4 + $0x48] sm:$0xff]
    %v239 = vld [vmem:[%s4 + $0x50] sm:$0xff]
    %v240 = vld [vmem:[%s4 + $0x58] sm:$0xff]
    %v241 = vld [vmem:[%s4 + $0x60] sm:$0xff]
    %v242 = vld [vmem:[%s4 + $0x68] sm:$0xff]
    %v243 = vld [vmem:[%s4 + $0x70] sm:$0xff]
    %v244 = vld [vmem:[%s4 + $0x78] sm:$0xff]
    %v245 = vld [vmem:[%s5] sm:$0x1]
    %v247 = vlaneseq
    %v248 = vshrl.u32 %v247, 7
    %v249 = vsub.s32 0, %v248
    %v250 = vrot.slane %v245, %v249
    %252 = vmatprep.subr.mxu0 0.0
    %253 = vmatpush1.msra.mxu0 %v229
    %254 = vmatprep.subr.mxu0 0.0
    %255 = vmatpush1.msra.mxu0 %v230
    %256 = vmatprep.subr.mxu0 0.0
    %257 = vmatpush1.msra.mxu0 %v231
    %258 = vmatprep.subr.mxu0 0.0
    %259 = vmatpush1.msra.mxu0 %v232
    %260 = vmatprep.subr.mxu0 0.0
    %261 = vmatpush1.msra.mxu0 %v233
    %262 = vmatprep.subr.mxu0 0.0
    %263 = vmatpush1.msra.mxu0 %v234
    %264 = vmatprep.subr.mxu0 0.0
    %265 = vmatpush1.msra.mxu0 %v235
    %266 = vmatprep.subr.mxu0 0.0
    %267 = vmatpush1.msra.mxu0 %v236
    %268 = vmatprep.subr.mxu0 0.0
    %269 = vmatpush1.msra.mxu0 %v237
    %270 = vmatprep.subr.mxu0 0.0
    %271 = vmatpush1.msra.mxu0 %v238
    %272 = vmatprep.subr.mxu0 0.0
    %273 = vmatpush1.msra.mxu0 %v239
    %274 = vmatprep.subr.mxu0 0.0
    %275 = vmatpush1.msra.mxu0 %v240
    %276 = vmatprep.subr.mxu0 0.0
    %277 = vmatpush1.msra.mxu0 %v241
    %278 = vmatprep.subr.mxu0 0.0
    %279 = vmatpush1.msra.mxu0 %v242
    %280 = vmatprep.subr.mxu0 0.0
    %281 = vmatpush1.msra.mxu0 %v243
    %282 = vmatprep.subr.mxu0 0.0
    %283 = vmatpush1.msra.mxu0 %v244
    %284 = vmatprep.subr.mxu0 0.0
    %285 = vmatpush1.msra.mxu0 0.0
    %286 = vmatprep.subr.mxu0 0.0
    %287 = vmatpush1.msra.mxu0 0.0
    %288 = vmatprep.subr.mxu0 0.0
    %289 = vmatpush1.msra.mxu0 0.0
    %290 = vmatprep.subr.mxu0 0.0
    %291 = vmatpush1.msra.mxu0 0.0
    %292 = vmatprep.subr.mxu0 0.0
    %293 = vmatpush1.msra.mxu0 0.0
    %294 = vmatprep.subr.mxu0 0.0
    %295 = vmatpush1.msra.mxu0 0.0
    %296 = vmatprep.subr.mxu0 0.0
    %297 = vmatpush1.msra.mxu0 0.0
    %298 = vmatprep.subr.mxu0 0.0
    %299 = vmatpush1.msra.mxu0 0.0
    %300 = vmatprep.subr.mxu0 0.0
    %301 = vmatpush1.msra.mxu0 0.0
    %302 = vmatprep.subr.mxu0 0.0
    %303 = vmatpush1.msra.mxu0 0.0
    %304 = vmatprep.subr.mxu0 0.0
    %305 = vmatpush1.msra.mxu0 0.0
    %306 = vmatprep.subr.mxu0 0.0
    %307 = vmatpush1.msra.mxu0 0.0
    %308 = vmatprep.subr.mxu0 0.0
    %309 = vmatpush1.msra.mxu0 0.0
    %310 = vmatprep.subr.mxu0 0.0
    %311 = vmatpush1.msra.mxu0 0.0
    %312 = vmatprep.subr.mxu0 0.0
    %313 = vmatpush1.msra.mxu0 0.0
    %314 = vmatprep.subr.mxu0 0.0
    %315 = vmatpush1.msra.mxu0 0.0
    %316 = vmatprep.mubr.f32.mxu0 0.0
    %317 = vmatmul.mubr.f32.gmra.mrb[0].mxu0 %v228
    %v318 = vpop.f32.mrb[0].mxu0
    %v319 = vadd.f32 %v250, %v318
    %v320 = vpop.f32.mrb[0].mxu0
    %321 = vdwg.mxu0
    %vm322 = vcmask 1041408
    %v323 = vsel %vm322, %v319, -inf
    %v324 = vrot.slane %v323, 4
    %v325 = vmax.f32 %v323, %v324
    %v326 = vrot.slane %v325, 2
    %v327 = vmax.f32 %v325, %v326
    %v328 = vrot.slane %v327, 1
    %v329 = vmax.f32 %v327, %v328
    %v330 = vsub.f32 %v319, %v329
    %v331 = vmul.f32 %v330, 1.442695
    %v332 = vpow.pop %v331
    %v333 = vsel %vm322, %v332, 0.0
    %v334 = vrot.slane %v333, 4
    %v335 = vadd.f32 %v333, %v334
    %v336 = vrot.slane %v335, 2
    %v337 = vadd.f32 %v335, %v336
    %v338 = vrot.slane %v337, 1
    %v339 = vadd.f32 %v337, %v338
    %v340 = vlog2.pop %v339
    %v341 = vmul.f32 %v340, 0.6931472
    %v342 = vadd.f32 %v341, %v329
    %v343 = vsub.f32 %v319, %v342
    %344 = vst [vmem:[#allocation2] sm:$0x3] %v343
    // Predicated region
    $region26: #{sage_dgl_forward.9} parent=1 // pred_check
      _
    $region27: #{sage_dgl_forward.9} parent=1 // pred_check_branch
      %346 = sbr.rel (0) target = $region29
    $region28: #{sage_dgl_forward.9} parent=1 // pred_region
      %s348 = ssub.s32 32, 32
      %349 = vsyncadd [#allocation3], %s348
      %s351 = sshll.u32 [#allocation2], 4
      %s352 = int_to_ptr.vmem [resolvable:$true] %s351
      %354 = dma.vmem_to_hbm [thread:$0]  %s352, 32, %s6, [#allocation3]
    $region29: #{sage_dgl_forward.9} parent=1 // pred_fallthru
      _
    // Predicated region
    $region30: #{sage_dgl_forward.9} parent=1 // pred_check
      _
    $region31: #{sage_dgl_forward.9} parent=1 // pred_check_branch
      %356 = sbr.rel (0) target = $region33
    $region32: #{sage_dgl_forward.9} parent=1 // pred_region
      %357 = dma.done [#allocation3], 32
    $region33: #{sage_dgl_forward.9} parent=1 // pred_fallthru
      _
    %358 = vsyncpa [#allocation3], 1

// kernel: sage_dgl_forward.5
$region0: #{sage_dgl_forward.5}
  #allocation0 [shape = 'u32[]', space=smem, size = 0x4, offset = 0x4, fixed_abs, tag = 'smem constant byte address 0x4 - core index']
  #allocation1 [shape = 'u32[144,128]{1,0:T(1,128)}', space=vmem, size = 0x12000, scoped, tag = 'internal scratch']
  #allocation2 [shape = 'f32[128,128]{1,0:T(8,128)}', space=vmem, size = 0x10000, scoped, tag = 'scratch operand']
  %s0 = inlined_call_operand.vmem [shape: bf16[128,128], index: 0, kind: input, shape index: {}]
  %s1 = inlined_call_operand.vmem [shape: bf16[128,128], index: 1, kind: input, shape index: {}, may-alias: {1,2}]
  %s2 = inlined_call_operand.vmem [shape: bf16[128,128], index: 2, kind: input, shape index: {}, may-alias: {1,2}]
  %s3 = inlined_call_operand.vmem [shape: bf16[256,128], index: 3, kind: input, shape index: {}]
  %s4 = inlined_call_operand.vmem [shape: f32[1,128], index: 4, kind: input, shape index: {}]
  %s5 = inlined_call_operand.vmem [shape: bf16[128,128], index: 5, kind: output, shape index: {}]
  %s6 = sld [smem:[#allocation0]]
  $region38: #{sage_dgl_forward.5} parent=0
    _
  %s8 = ssub.s32 1, %s6
  %s9 = scalar_select 0, %s8, %s6
  // Predicated region
  $region2: #{sage_dgl_forward.5} parent=0 // pred_check
    _
  $region3: #{sage_dgl_forward.5} parent=0 // pred_check_branch
    %11 = sbr.rel (0) target = $region5
  $region4: #{sage_dgl_forward.5} parent=0 // pred_region
    _
  $region5: #{sage_dgl_forward.5} parent=0 // pred_fallthru
    _
  // Predicated region
  $region6: #{sage_dgl_forward.5} parent=0 // pred_check
    _
  $region7: #{sage_dgl_forward.5} parent=0 // pred_check_branch
    %13 = sbr.rel (0) target = $region9
  $region8: #{sage_dgl_forward.5} parent=0 // pred_region
    _
  $region9: #{sage_dgl_forward.5} parent=0 // pred_fallthru
    _
  // Predicated region
  $region10: #{sage_dgl_forward.5} parent=0 // pred_check
    _
  $region11: #{sage_dgl_forward.5} parent=0 // pred_check_branch
    %15 = sbr.rel (0) target = $region13
  $region12: #{sage_dgl_forward.5} parent=0 // pred_region
    _
  $region13: #{sage_dgl_forward.5} parent=0 // pred_fallthru
    _
  // Predicated region
  $region14: #{sage_dgl_forward.5} parent=0 // pred_check
    _
  $region15: #{sage_dgl_forward.5} parent=0 // pred_check_branch
    %17 = sbr.rel (0) target = $region17
  $region16: #{sage_dgl_forward.5} parent=0 // pred_region
    _
  $region17: #{sage_dgl_forward.5} parent=0 // pred_fallthru
    _
  // Predicated region
  $region18: #{sage_dgl_forward.5} parent=0 // pred_check
    _
  $region19: #{sage_dgl_forward.5} parent=0 // pred_check_branch
    %19 = sbr.rel (0) target = $region21
  $region20: #{sage_dgl_forward.5} parent=0 // pred_region
    _
  $region21: #{sage_dgl_forward.5} parent=0 // pred_fallthru
    _
  %p21 = scmp.eq.s32.totalorder 0, 0
  // Predicated region
  $region22: #{sage_dgl_forward.5} parent=0 // pred_check
    %p22 = pneg %p21
  $region23: #{sage_dgl_forward.5} parent=0 // pred_check_branch
    %24 = sbr.rel (%p22) target = $region25
  $region24: #{sage_dgl_forward.5} parent=0 // pred_region
    %25 = vst [vmem:[#allocation2] sm:$0xff] 0.0
    %26 = vst [vmem:[#allocation2 + $0x8] sm:$0xff] 0.0
    %27 = vst [vmem:[#allocation2 + $0x10] sm:$0xff] 0.0
    %28 = vst [vmem:[#allocation2 + $0x18] sm:$0xff] 0.0
    %29 = vst [vmem:[#allocation2 + $0x20] sm:$0xff] 0.0
    %30 = vst [vmem:[#allocation2 + $0x28] sm:$0xff] 0.0
    %31 = vst [vmem:[#allocation2 + $0x30] sm:$0xff] 0.0
    %32 = vst [vmem:[#allocation2 + $0x38] sm:$0xff] 0.0
    %33 = vst [vmem:[#allocation2 + $0x40] sm:$0xff] 0.0
    %34 = vst [vmem:[#allocation2 + $0x48] sm:$0xff] 0.0
    %35 = vst [vmem:[#allocation2 + $0x50] sm:$0xff] 0.0
    %36 = vst [vmem:[#allocation2 + $0x58] sm:$0xff] 0.0
    %37 = vst [vmem:[#allocation2 + $0x60] sm:$0xff] 0.0
    %38 = vst [vmem:[#allocation2 + $0x68] sm:$0xff] 0.0
    %39 = vst [vmem:[#allocation2 + $0x70] sm:$0xff] 0.0
    %40 = vst [vmem:[#allocation2 + $0x78] sm:$0xff] 0.0
  $region25: #{sage_dgl_forward.5} parent=0 // pred_fallthru
    _
  %v41 = vld [vmem:[#allocation2] sm:$0xff]
  %v42 = vld [vmem:[#allocation2 + $0x8] sm:$0xff]
  %v43 = vld [vmem:[#allocation2 + $0x10] sm:$0xff]
  %v44 = vld [vmem:[#allocation2 + $0x18] sm:$0xff]
  %v45 = vld [vmem:[#allocation2 + $0x20] sm:$0xff]
  %v46 = vld [vmem:[#allocation2 + $0x28] sm:$0xff]
  %v47 = vld [vmem:[#allocation2 + $0x30] sm:$0xff]
  %v48 = vld [vmem:[#allocation2 + $0x38] sm:$0xff]
  %v49 = vld [vmem:[#allocation2 + $0x40] sm:$0xff]
  %v50 = vld [vmem:[#allocation2 + $0x48] sm:$0xff]
  %v51 = vld [vmem:[#allocation2 + $0x50] sm:$0xff]
  %v52 = vld [vmem:[#allocation2 + $0x58] sm:$0xff]
  %v53 = vld [vmem:[#allocation2 + $0x60] sm:$0xff]
  %v54 = vld [vmem:[#allocation2 + $0x68] sm:$0xff]
  %v55 = vld [vmem:[#allocation2 + $0x70] sm:$0xff]
  %v56 = vld [vmem:[#allocation2 + $0x78] sm:$0xff]
  %v57 = vld [vmem:[%s0] sm:$0xf]
  %v58 = vld [vmem:[%s0 + $0x4] sm:$0xf]
  %v59 = vld [vmem:[%s0 + $0x8] sm:$0xf]
  %v60 = vld [vmem:[%s0 + $0xc] sm:$0xf]
  %v61 = vld [vmem:[%s0 + $0x10] sm:$0xf]
  %v62 = vld [vmem:[%s0 + $0x14] sm:$0xf]
  %v63 = vld [vmem:[%s0 + $0x18] sm:$0xf]
  %v64 = vld [vmem:[%s0 + $0x1c] sm:$0xf]
  %v65 = vld [vmem:[%s0 + $0x20] sm:$0xf]
  %v66 = vld [vmem:[%s0 + $0x24] sm:$0xf]
  %v67 = vld [vmem:[%s0 + $0x28] sm:$0xf]
  %v68 = vld [vmem:[%s0 + $0x2c] sm:$0xf]
  %v69 = vld [vmem:[%s0 + $0x30] sm:$0xf]
  %v70 = vld [vmem:[%s0 + $0x34] sm:$0xf]
  %v71 = vld [vmem:[%s0 + $0x38] sm:$0xf]
  %v72 = vld [vmem:[%s0 + $0x3c] sm:$0xf]
  %v73 = vld [vmem:[%s1] sm:$0xf]
  %v74 = vld [vmem:[%s1 + $0x4] sm:$0xf]
  %v75 = vld [vmem:[%s1 + $0x8] sm:$0xf]
  %v76 = vld [vmem:[%s1 + $0xc] sm:$0xf]
  %v77 = vld [vmem:[%s1 + $0x10] sm:$0xf]
  %v78 = vld [vmem:[%s1 + $0x14] sm:$0xf]
  %v79 = vld [vmem:[%s1 + $0x18] sm:$0xf]
  %v80 = vld [vmem:[%s1 + $0x1c] sm:$0xf]
  %v81 = vld [vmem:[%s1 + $0x20] sm:$0xf]
  %v82 = vld [vmem:[%s1 + $0x24] sm:$0xf]
  %v83 = vld [vmem:[%s1 + $0x28] sm:$0xf]
  %v84 = vld [vmem:[%s1 + $0x2c] sm:$0xf]
  %v85 = vld [vmem:[%s1 + $0x30] sm:$0xf]
  %v86 = vld [vmem:[%s1 + $0x34] sm:$0xf]
  %v87 = vld [vmem:[%s1 + $0x38] sm:$0xf]
  %v88 = vld [vmem:[%s1 + $0x3c] sm:$0xf]
  %v105 = vunpack.c.l.b16 %v57
  %v106 = vunpack.c.l.b16 %v58
  %v107 = vunpack.c.l.b16 %v59
  %v108 = vunpack.c.l.b16 %v60
  %v109 = vunpack.c.l.b16 %v61
  %v110 = vunpack.c.l.b16 %v62
  %v111 = vunpack.c.l.b16 %v63
  %v112 = vunpack.c.l.b16 %v64
  %v113 = vunpack.c.l.b16 %v65
  %v114 = vunpack.c.l.b16 %v66
  %v115 = vunpack.c.l.b16 %v67
  %v116 = vunpack.c.l.b16 %v68
  %v117 = vunpack.c.l.b16 %v69
  %v118 = vunpack.c.l.b16 %v70
  %v119 = vunpack.c.l.b16 %v71
  %v120 = vunpack.c.l.b16 %v72
  %v121 = vpack.c.b16 %v106, %v105
  %v122 = vpack.c.b16 %v108, %v107
  %v123 = vpack.c.b16 %v110, %v109
  %v124 = vpack.c.b16 %v112, %v111
  %v125 = vpack.c.b16 %v114, %v113
  %v126 = vpack.c.b16 %v116, %v115
  %v127 = vpack.c.b16 %v118, %v117
  %v128 = vpack.c.b16 %v120, %v119
  %v153 = vunpack.c.l.b16 %v73
  %v154 = vunpack.c.l.b16 %v74
  %v155 = vunpack.c.l.b16 %v75
  %v156 = vunpack.c.l.b16 %v76
  %v157 = vunpack.c.l.b16 %v77
  %v158 = vunpack.c.l.b16 %v78
  %v159 = vunpack.c.l.b16 %v79
  %v160 = vunpack.c.l.b16 %v80
  %v161 = vunpack.c.l.b16 %v81
  %v162 = vunpack.c.l.b16 %v82
  %v163 = vunpack.c.l.b16 %v83
  %v164 = vunpack.c.l.b16 %v84
  %v165 = vunpack.c.l.b16 %v85
  %v166 = vunpack.c.l.b16 %v86
  %v167 = vunpack.c.l.b16 %v87
  %v168 = vunpack.c.l.b16 %v88
  %v169 = vpack.c.b16 %v154, %v153
  %v170 = vpack.c.b16 %v156, %v155
  %v171 = vpack.c.b16 %v158, %v157
  %v172 = vpack.c.b16 %v160, %v159
  %v173 = vpack.c.b16 %v162, %v161
  %v174 = vpack.c.b16 %v164, %v163
  %v175 = vpack.c.b16 %v166, %v165
  %v176 = vpack.c.b16 %v168, %v167
  %185 = vmatprep.subr.bf16.mxu0 0
  %186 = vmatpush1.bf16.msra.mxu0 %v169
  %187 = vmatprep.subr.bf16.mxu0 0
  %188 = vmatpush1.bf16.msra.mxu0 %v170
  %189 = vmatprep.subr.bf16.mxu0 0
  %190 = vmatpush1.bf16.msra.mxu0 %v171
  %191 = vmatprep.subr.bf16.mxu0 0
  %192 = vmatpush1.bf16.msra.mxu0 %v172
  %193 = vmatprep.subr.bf16.mxu0 0
  %194 = vmatpush1.bf16.msra.mxu0 %v173
  %195 = vmatprep.subr.bf16.mxu0 0
  %196 = vmatpush1.bf16.msra.mxu0 %v174
  %197 = vmatprep.subr.bf16.mxu0 0
  %198 = vmatpush1.bf16.msra.mxu0 %v175
  %199 = vmatprep.subr.bf16.mxu0 0
  %200 = vmatpush1.bf16.msra.mxu0 %v176
  %201 = vmatprep.subr.bf16.mxu0 0
  %202 = vmatpush1.bf16.msra.mxu0 0
  %203 = vmatprep.subr.bf16.mxu0 0
  %204 = vmatpush1.bf16.msra.mxu0 0
  %205 = vmatprep.subr.bf16.mxu0 0
  %206 = vmatpush1.bf16.msra.mxu0 0
  %207 = vmatprep.subr.bf16.mxu0 0
  %208 = vmatpush1.bf16.msra.mxu0 0
  %209 = vmatprep.subr.bf16.mxu0 0
  %210 = vmatpush1.bf16.msra.mxu0 0
  %211 = vmatprep.subr.bf16.mxu0 0
  %212 = vmatpush1.bf16.msra.mxu0 0
  %213 = vmatprep.subr.bf16.mxu0 0
  %214 = vmatpush1.bf16.msra.mxu0 0
  %215 = vmatprep.subr.bf16.mxu0 0
  %216 = vmatpush1.bf16.msra.mxu0 0
  %217 = vmatprep.mubr.bf16.mxu0 0
  %218 = vmatmul.mubr.bf16.gmra.mrb[0].mxu0 %v121
  %v219 = vpop.f32.mrb[0].mxu0
  %v220 = vadd.f32 0.0, %v219
  %v221 = vpop.f32.mrb[0].mxu0
  %v222 = vpop.f32.mrb[0].mxu0
  %v223 = vadd.f32 0.0, %v222
  %v224 = vpop.f32.mrb[0].mxu0
  %225 = vmatprep.mubr.bf16.mxu0 0
  %226 = vmatmul.mubr.bf16.gmra.mrb[0].mxu0 %v122
  %v227 = vpop.f32.mrb[0].mxu0
  %v228 = vadd.f32 0.0, %v227
  %v229 = vpop.f32.mrb[0].mxu0
  %v230 = vpop.f32.mrb[0].mxu0
  %v231 = vadd.f32 0.0, %v230
  %v232 = vpop.f32.mrb[0].mxu0
  %233 = vmatprep.mubr.bf16.mxu0 0
  %234 = vmatmul.mubr.bf16.gmra.mrb[0].mxu0 %v123
  %v235 = vpop.f32.mrb[0].mxu0
  %v236 = vadd.f32 0.0, %v235
  %v237 = vpop.f32.mrb[0].mxu0
  %v238 = vpop.f32.mrb[0].mxu0
  %v239 = vadd.f32 0.0, %v238
  %v240 = vpop.f32.mrb[0].mxu0
  %241 = vmatprep.mubr.bf16.mxu0 0
  %242 = vmatmul.mubr.bf16.gmra.mrb[0].mxu0 %v124
  %v243 = vpop.f32.mrb[0].mxu0
  %v244 = vadd.f32 0.0, %v243
  %v245 = vpop.f32.mrb[0].mxu0
  %v246 = vpop.f32.mrb[0].mxu0
  %v247 = vadd.f32 0.0, %v246
  %v248 = vpop.f32.mrb[0].mxu0
  %249 = vmatprep.mubr.bf16.mxu0 0
  %250 = vmatmul.mubr.bf16.gmra.mrb[0].mxu0 %v125
  %v251 = vpop.f32.mrb[0].mxu0
  %v252 = vadd.f32 0.0, %v251
  %v253 = vpop.f32.mrb[0].mxu0
  %v254 = vpop.f32.mrb[0].mxu0
  %v255 = vadd.f32 0.0, %v254
  %v256 = vpop.f32.mrb[0].mxu0
  %257 = vmatprep.mubr.bf16.mxu0 0
  %258 = vmatmul.mubr.bf16.gmra.mrb[0].mxu0 %v126
  %v259 = vpop.f32.mrb[0].mxu0
  %v260 = vadd.f32 0.0, %v259
  %v261 = vpop.f32.mrb[0].mxu0
  %v262 = vpop.f32.mrb[0].mxu0
  %v263 = vadd.f32 0.0, %v262
  %v264 = vpop.f32.mrb[0].mxu0
  %265 = vmatprep.mubr.bf16.mxu0 0
  %266 = vmatmul.mubr.bf16.gmra.mrb[0].mxu0 %v127
  %v267 = vpop.f32.mrb[0].mxu0
  %v268 = vadd.f32 0.0, %v267
  %v269 = vpop.f32.mrb[0].mxu0
  %v270 = vpop.f32.mrb[0].mxu0
  %v271 = vadd.f32 0.0, %v270
  %v272 = vpop.f32.mrb[0].mxu0
  %273 = vmatprep.mubr.bf16.mxu0 0
  %274 = vmatmul.mubr.bf16.gmra.mrb[0].mxu0 %v128
  %v275 = vpop.f32.mrb[0].mxu0
  %v276 = vadd.f32 0.0, %v275
  %v277 = vpop.f32.mrb[0].mxu0
  %v278 = vpop.f32.mrb[0].mxu0
  %v279 = vadd.f32 0.0, %v278
  %v280 = vpop.f32.mrb[0].mxu0
  %281 = vdwg.mxu0
  %v282 = vadd.f32 %v41, %v220
  %v283 = vadd.f32 %v42, %v223
  %v284 = vadd.f32 %v43, %v228
  %v285 = vadd.f32 %v44, %v231
  %v286 = vadd.f32 %v45, %v236
  %v287 = vadd.f32 %v46, %v239
  %v288 = vadd.f32 %v47, %v244
  %v289 = vadd.f32 %v48, %v247
  %v290 = vadd.f32 %v49, %v252
  %v291 = vadd.f32 %v50, %v255
  %v292 = vadd.f32 %v51, %v260
  %v293 = vadd.f32 %v52, %v263
  %v294 = vadd.f32 %v53, %v268
  %v295 = vadd.f32 %v54, %v271
  %v296 = vadd.f32 %v55, %v276
  %v297 = vadd.f32 %v56, %v279
  %298 = vst [vmem:[#allocation2] sm:$0xff] %v282
  %299 = vst [vmem:[#allocation2 + $0x8] sm:$0xff] %v283
  %300 = vst [vmem:[#allocation2 + $0x10] sm:$0xff] %v284
  %301 = vst [vmem:[#allocation2 + $0x18] sm:$0xff] %v285
  %302 = vst [vmem:[#allocation2 + $0x20] sm:$0xff] %v286
  %303 = vst [vmem:[#allocation2 + $0x28] sm:$0xff] %v287
  %304 = vst [vmem:[#allocation2 + $0x30] sm:$0xff] %v288
  %305 = vst [vmem:[#allocation2 + $0x38] sm:$0xff] %v289
  %306 = vst [vmem:[#allocation2 + $0x40] sm:$0xff] %v290
  %307 = vst [vmem:[#allocation2 + $0x48] sm:$0xff] %v291
  %308 = vst [vmem:[#allocation2 + $0x50] sm:$0xff] %v292
  %309 = vst [vmem:[#allocation2 + $0x58] sm:$0xff] %v293
  %310 = vst [vmem:[#allocation2 + $0x60] sm:$0xff] %v294
  %311 = vst [vmem:[#allocation2 + $0x68] sm:$0xff] %v295
  %312 = vst [vmem:[#allocation2 + $0x70] sm:$0xff] %v296
  %313 = vst [vmem:[#allocation2 + $0x78] sm:$0xff] %v297
  // Predicated region
  $region26: #{sage_dgl_forward.5} parent=0 // pred_check
    %p314 = pneg %p21
  $region27: #{sage_dgl_forward.5} parent=0 // pred_check_branch
    %316 = sbr.rel (%p314) target = $region29
  $region28: #{sage_dgl_forward.5} parent=0 // pred_region
    %v317 = vld [vmem:[#allocation2] sm:$0xff]
    %v318 = vld [vmem:[#allocation2 + $0x8] sm:$0xff]
    %v319 = vld [vmem:[#allocation2 + $0x10] sm:$0xff]
    %v320 = vld [vmem:[#allocation2 + $0x18] sm:$0xff]
    %v321 = vld [vmem:[#allocation2 + $0x20] sm:$0xff]
    %v322 = vld [vmem:[#allocation2 + $0x28] sm:$0xff]
    %v323 = vld [vmem:[#allocation2 + $0x30] sm:$0xff]
    %v324 = vld [vmem:[#allocation2 + $0x38] sm:$0xff]
    %v325 = vld [vmem:[#allocation2 + $0x40] sm:$0xff]
    %v326 = vld [vmem:[#allocation2 + $0x48] sm:$0xff]
    %v327 = vld [vmem:[#allocation2 + $0x50] sm:$0xff]
    %v328 = vld [vmem:[#allocation2 + $0x58] sm:$0xff]
    %v329 = vld [vmem:[#allocation2 + $0x60] sm:$0xff]
    %v330 = vld [vmem:[#allocation2 + $0x68] sm:$0xff]
    %v331 = vld [vmem:[#allocation2 + $0x70] sm:$0xff]
    %v332 = vld [vmem:[#allocation2 + $0x78] sm:$0xff]
    %v333 = vpack.c.bf16 %v318, %v317
    %v334 = vpack.c.bf16 %v320, %v319
    %v335 = vpack.c.bf16 %v322, %v321
    %v336 = vpack.c.bf16 %v324, %v323
    %v337 = vpack.c.bf16 %v326, %v325
    %v338 = vpack.c.bf16 %v328, %v327
    %v339 = vpack.c.bf16 %v330, %v329
    %v340 = vpack.c.bf16 %v332, %v331
    %v341 = vld [vmem:[%s2] sm:$0xf]
    %v342 = vld [vmem:[%s2 + $0x4] sm:$0xf]
    %v343 = vld [vmem:[%s2 + $0x8] sm:$0xf]
    %v344 = vld [vmem:[%s2 + $0xc] sm:$0xf]
    %v345 = vld [vmem:[%s2 + $0x10] sm:$0xf]
    %v346 = vld [vmem:[%s2 + $0x14] sm:$0xf]
    %v347 = vld [vmem:[%s2 + $0x18] sm:$0xf]
    %v348 = vld [vmem:[%s2 + $0x1c] sm:$0xf]
    %v349 = vld [vmem:[%s2 + $0x20] sm:$0xf]
    %v350 = vld [vmem:[%s2 + $0x24] sm:$0xf]
    %v351 = vld [vmem:[%s2 + $0x28] sm:$0xf]
    %v352 = vld [vmem:[%s2 + $0x2c] sm:$0xf]
    %v353 = vld [vmem:[%s2 + $0x30] sm:$0xf]
    %v354 = vld [vmem:[%s2 + $0x34] sm:$0xf]
    %v355 = vld [vmem:[%s2 + $0x38] sm:$0xf]
    %v356 = vld [vmem:[%s2 + $0x3c] sm:$0xf]
    %v373 = vunpack.c.l.b16 %v341
    %v374 = vunpack.c.l.b16 %v342
    %v375 = vunpack.c.l.b16 %v343
    %v376 = vunpack.c.l.b16 %v344
    %v377 = vunpack.c.l.b16 %v345
    %v378 = vunpack.c.l.b16 %v346
    %v379 = vunpack.c.l.b16 %v347
    %v380 = vunpack.c.l.b16 %v348
    %v381 = vunpack.c.l.b16 %v349
    %v382 = vunpack.c.l.b16 %v350
    %v383 = vunpack.c.l.b16 %v351
    %v384 = vunpack.c.l.b16 %v352
    %v385 = vunpack.c.l.b16 %v353
    %v386 = vunpack.c.l.b16 %v354
    %v387 = vunpack.c.l.b16 %v355
    %v388 = vunpack.c.l.b16 %v356
    %v389 = vpack.c.b16 %v374, %v373
    %v390 = vpack.c.b16 %v376, %v375
    %v391 = vpack.c.b16 %v378, %v377
    %v392 = vpack.c.b16 %v380, %v379
    %v393 = vpack.c.b16 %v382, %v381
    %v394 = vpack.c.b16 %v384, %v383
    %v395 = vpack.c.b16 %v386, %v385
    %v396 = vpack.c.b16 %v388, %v387
    %v405 = vld [vmem:[%s3] sm:$0xf]
    %v406 = vld [vmem:[%s3 + $0x4] sm:$0xf]
    %v407 = vld [vmem:[%s3 + $0x8] sm:$0xf]
    %v408 = vld [vmem:[%s3 + $0xc] sm:$0xf]
    %v409 = vld [vmem:[%s3 + $0x10] sm:$0xf]
    %v410 = vld [vmem:[%s3 + $0x14] sm:$0xf]
    %v411 = vld [vmem:[%s3 + $0x18] sm:$0xf]
    %v412 = vld [vmem:[%s3 + $0x1c] sm:$0xf]
    %v413 = vld [vmem:[%s3 + $0x20] sm:$0xf]
    %v414 = vld [vmem:[%s3 + $0x24] sm:$0xf]
    %v415 = vld [vmem:[%s3 + $0x28] sm:$0xf]
    %v416 = vld [vmem:[%s3 + $0x2c] sm:$0xf]
    %v417 = vld [vmem:[%s3 + $0x30] sm:$0xf]
    %v418 = vld [vmem:[%s3 + $0x34] sm:$0xf]
    %v419 = vld [vmem:[%s3 + $0x38] sm:$0xf]
    %v420 = vld [vmem:[%s3 + $0x3c] sm:$0xf]
    %v421 = vld [vmem:[%s3 + $0x40] sm:$0xf]
    %v422 = vld [vmem:[%s3 + $0x44] sm:$0xf]
    %v423 = vld [vmem:[%s3 + $0x48] sm:$0xf]
    %v424 = vld [vmem:[%s3 + $0x4c] sm:$0xf]
    %v425 = vld [vmem:[%s3 + $0x50] sm:$0xf]
    %v426 = vld [vmem:[%s3 + $0x54] sm:$0xf]
    %v427 = vld [vmem:[%s3 + $0x58] sm:$0xf]
    %v428 = vld [vmem:[%s3 + $0x5c] sm:$0xf]
    %v429 = vld [vmem:[%s3 + $0x60] sm:$0xf]
    %v430 = vld [vmem:[%s3 + $0x64] sm:$0xf]
    %v431 = vld [vmem:[%s3 + $0x68] sm:$0xf]
    %v432 = vld [vmem:[%s3 + $0x6c] sm:$0xf]
    %v433 = vld [vmem:[%s3 + $0x70] sm:$0xf]
    %v434 = vld [vmem:[%s3 + $0x74] sm:$0xf]
    %v435 = vld [vmem:[%s3 + $0x78] sm:$0xf]
    %v436 = vld [vmem:[%s3 + $0x7c] sm:$0xf]
    %v437 = vld [vmem:[%s4] sm:$0x1]
    %v439 = vlaneseq
    %v440 = vshrl.u32 %v439, 7
    %v441 = vsub.s32 0, %v440
    %v442 = vrot.slane %v437, %v441
    %v476 = vunpack.c.l.b16 %v405
    %v477 = vunpack.c.l.b16 %v406
    %v478 = vunpack.c.l.b16 %v407
    %v479 = vunpack.c.l.b16 %v408
    %v480 = vunpack.c.l.b16 %v409
    %v481 = vunpack.c.l.b16 %v410
    %v482 = vunpack.c.l.b16 %v411
    %v483 = vunpack.c.l.b16 %v412
    %v484 = vunpack.c.l.b16 %v413
    %v485 = vunpack.c.l.b16 %v414
    %v486 = vunpack.c.l.b16 %v415
    %v487 = vunpack.c.l.b16 %v416
    %v488 = vunpack.c.l.b16 %v417
    %v489 = vunpack.c.l.b16 %v418
    %v490 = vunpack.c.l.b16 %v419
    %v491 = vunpack.c.l.b16 %v420
    %v492 = vunpack.c.l.b16 %v421
    %v493 = vunpack.c.l.b16 %v422
    %v494 = vunpack.c.l.b16 %v423
    %v495 = vunpack.c.l.b16 %v424
    %v496 = vunpack.c.l.b16 %v425
    %v497 = vunpack.c.l.b16 %v426
    %v498 = vunpack.c.l.b16 %v427
    %v499 = vunpack.c.l.b16 %v428
    %v500 = vunpack.c.l.b16 %v429
    %v501 = vunpack.c.l.b16 %v430
    %v502 = vunpack.c.l.b16 %v431
    %v503 = vunpack.c.l.b16 %v432
    %v504 = vunpack.c.l.b16 %v433
    %v505 = vunpack.c.l.b16 %v434
    %v506 = vunpack.c.l.b16 %v435
    %v507 = vunpack.c.l.b16 %v436
    %v508 = vpack.c.b16 %v477, %v476
    %v509 = vpack.c.b16 %v479, %v478
    %v510 = vpack.c.b16 %v481, %v480
    %v511 = vpack.c.b16 %v483, %v482
    %v512 = vpack.c.b16 %v485, %v484
    %v513 = vpack.c.b16 %v487, %v486
    %v514 = vpack.c.b16 %v489, %v488
    %v515 = vpack.c.b16 %v491, %v490
    %v516 = vpack.c.b16 %v493, %v492
    %v517 = vpack.c.b16 %v495, %v494
    %v518 = vpack.c.b16 %v497, %v496
    %v519 = vpack.c.b16 %v499, %v498
    %v520 = vpack.c.b16 %v501, %v500
    %v521 = vpack.c.b16 %v503, %v502
    %v522 = vpack.c.b16 %v505, %v504
    %v523 = vpack.c.b16 %v507, %v506
    %540 = vmatprep.subr.bf16.mxu0 0
    %541 = vmatpush1.bf16.msra.mxu0 %v508
    %542 = vmatprep.subr.bf16.mxu0 0
    %543 = vmatpush1.bf16.msra.mxu0 %v509
    %544 = vmatprep.subr.bf16.mxu0 0
    %545 = vmatpush1.bf16.msra.mxu0 %v510
    %546 = vmatprep.subr.bf16.mxu0 0
    %547 = vmatpush1.bf16.msra.mxu0 %v511
    %548 = vmatprep.subr.bf16.mxu0 0
    %549 = vmatpush1.bf16.msra.mxu0 %v512
    %550 = vmatprep.subr.bf16.mxu0 0
    %551 = vmatpush1.bf16.msra.mxu0 %v513
    %552 = vmatprep.subr.bf16.mxu0 0
    %553 = vmatpush1.bf16.msra.mxu0 %v514
    %554 = vmatprep.subr.bf16.mxu0 0
    %555 = vmatpush1.bf16.msra.mxu0 %v515
    %556 = vmatprep.subr.bf16.mxu0 0
    %557 = vmatpush1.bf16.msra.mxu0 %v516
    %558 = vmatprep.subr.bf16.mxu0 0
    %559 = vmatpush1.bf16.msra.mxu0 %v517
    %560 = vmatprep.subr.bf16.mxu0 0
    %561 = vmatpush1.bf16.msra.mxu0 %v518
    %562 = vmatprep.subr.bf16.mxu0 0
    %563 = vmatpush1.bf16.msra.mxu0 %v519
    %564 = vmatprep.subr.bf16.mxu0 0
    %565 = vmatpush1.bf16.msra.mxu0 %v520
    %566 = vmatprep.subr.bf16.mxu0 0
    %567 = vmatpush1.bf16.msra.mxu0 %v521
    %568 = vmatprep.subr.bf16.mxu0 0
    %569 = vmatpush1.bf16.msra.mxu0 %v522
    %570 = vmatprep.subr.bf16.mxu0 0
    %571 = vmatpush1.bf16.msra.mxu0 %v523
    %572 = vmatprep.mubr.bf16.mxu0 %v333
    %573 = vmatmul.mubr.bf16.gmra.mrb[0].mxu0 %v389
    %v574 = vpop.f32.mrb[0].mxu0
    %v575 = vadd.f32 %v442, %v574
    %v576 = vpop.f32.mrb[0].mxu0
    %v577 = vpop.f32.mrb[0].mxu0
    %v578 = vadd.f32 %v442, %v577
    %v579 = vpop.f32.mrb[0].mxu0
    %580 = vmatprep.mubr.bf16.mxu0 %v334
    %581 = vmatmul.mubr.bf16.gmra.mrb[0].mxu0 %v390
    %v582 = vpop.f32.mrb[0].mxu0
    %v583 = vadd.f32 %v442, %v582
    %v584 = vpop.f32.mrb[0].mxu0
    %v585 = vpop.f32.mrb[0].mxu0
    %v586 = vadd.f32 %v442, %v585
    %v587 = vpop.f32.mrb[0].mxu0
    %588 = vmatprep.mubr.bf16.mxu0 %v335
    %589 = vmatmul.mubr.bf16.gmra.mrb[0].mxu0 %v391
    %v590 = vpop.f32.mrb[0].mxu0
    %v591 = vadd.f32 %v442, %v590
    %v592 = vpop.f32.mrb[0].mxu0
    %v593 = vpop.f32.mrb[0].mxu0
    %v594 = vadd.f32 %v442, %v593
    %v595 = vpop.f32.mrb[0].mxu0
    %596 = vmatprep.mubr.bf16.mxu0 %v336
    %597 = vmatmul.mubr.bf16.gmra.mrb[0].mxu0 %v392
    %v598 = vpop.f32.mrb[0].mxu0
    %v599 = vadd.f32 %v442, %v598
    %v600 = vpop.f32.mrb[0].mxu0
    %v601 = vpop.f32.mrb[0].mxu0
    %v602 = vadd.f32 %v442, %v601
    %v603 = vpop.f32.mrb[0].mxu0
    %604 = vmatprep.mubr.bf16.mxu0 %v337
    %605 = vmatmul.mubr.bf16.gmra.mrb[0].mxu0 %v393
    %v606 = vpop.f32.mrb[0].mxu0
    %v607 = vadd.f32 %v442, %v606
    %v608 = vpop.f32.mrb[0].mxu0
    %v609 = vpop.f32.mrb[0].mxu0
    %v610 = vadd.f32 %v442, %v609
    %v611 = vpop.f32.mrb[0].mxu0
    %612 = vmatprep.mubr.bf16.mxu0 %v338
    %613 = vmatmul.mubr.bf16.gmra.mrb[0].mxu0 %v394
    %v614 = vpop.f32.mrb[0].mxu0
    %v615 = vadd.f32 %v442, %v614
    %v616 = vpop.f32.mrb[0].mxu0
    %v617 = vpop.f32.mrb[0].mxu0
    %v618 = vadd.f32 %v442, %v617
    %v619 = vpop.f32.mrb[0].mxu0
    %620 = vmatprep.mubr.bf16.mxu0 %v339
    %621 = vmatmul.mubr.bf16.gmra.mrb[0].mxu0 %v395
    %v622 = vpop.f32.mrb[0].mxu0
    %v623 = vadd.f32 %v442, %v622
    %v624 = vpop.f32.mrb[0].mxu0
    %v625 = vpop.f32.mrb[0].mxu0
    %v626 = vadd.f32 %v442, %v625
    %v627 = vpop.f32.mrb[0].mxu0
    %628 = vmatprep.mubr.bf16.mxu0 %v340
    %629 = vmatmul.mubr.bf16.gmra.mrb[0].mxu0 %v396
    %v630 = vpop.f32.mrb[0].mxu0
    %v631 = vadd.f32 %v442, %v630
    %v632 = vpop.f32.mrb[0].mxu0
    %v633 = vpop.f32.mrb[0].mxu0
    %v634 = vadd.f32 %v442, %v633
    %v635 = vpop.f32.mrb[0].mxu0
    %636 = vdwg.mxu0
    %v637 = vmax.f32 %v575, 0.0
    %v638 = vmax.f32 %v578, 0.0
    %v639 = vmax.f32 %v583, 0.0
    %v640 = vmax.f32 %v586, 0.0
    %v641 = vmax.f32 %v591, 0.0
    %v642 = vmax.f32 %v594, 0.0
    %v643 = vmax.f32 %v599, 0.0
    %v644 = vmax.f32 %v602, 0.0
    %v645 = vmax.f32 %v607, 0.0
    %v646 = vmax.f32 %v610, 0.0
    %v647 = vmax.f32 %v615, 0.0
    %v648 = vmax.f32 %v618, 0.0
    %v649 = vmax.f32 %v623, 0.0
    %v650 = vmax.f32 %v626, 0.0
    %v651 = vmax.f32 %v631, 0.0
    %v652 = vmax.f32 %v634, 0.0
    %v653 = vpack.c.bf16 %v638, %v637
    %v654 = vpack.c.bf16 %v640, %v639
    %v655 = vpack.c.bf16 %v642, %v641
    %v656 = vpack.c.bf16 %v644, %v643
    %v657 = vpack.c.bf16 %v646, %v645
    %v658 = vpack.c.bf16 %v648, %v647
    %v659 = vpack.c.bf16 %v650, %v649
    %v660 = vpack.c.bf16 %v652, %v651
    %v669 = vunpack.c.l.b16 %v653
    %v670 = vunpack.c.h.b16 %v653
    %v671 = vunpack.c.l.b16 %v654
    %v672 = vunpack.c.h.b16 %v654
    %v673 = vunpack.c.l.b16 %v655
    %v674 = vunpack.c.h.b16 %v655
    %v675 = vunpack.c.l.b16 %v656
    %v676 = vunpack.c.h.b16 %v656
    %v677 = vunpack.c.l.b16 %v657
    %v678 = vunpack.c.h.b16 %v657
    %v679 = vunpack.c.l.b16 %v658
    %v680 = vunpack.c.h.b16 %v658
    %v681 = vunpack.c.l.b16 %v659
    %v682 = vunpack.c.h.b16 %v659
    %v683 = vunpack.c.l.b16 %v660
    %v684 = vunpack.c.h.b16 %v660
    %v685 = vpack.c.b16 %v669, %v669
    %v686 = vpack.c.b16 %v670, %v670
    %v687 = vpack.c.b16 %v671, %v671
    %v688 = vpack.c.b16 %v672, %v672
    %v689 = vpack.c.b16 %v673, %v673
    %v690 = vpack.c.b16 %v674, %v674
    %v691 = vpack.c.b16 %v675, %v675
    %v692 = vpack.c.b16 %v676, %v676
    %v693 = vpack.c.b16 %v677, %v677
    %v694 = vpack.c.b16 %v678, %v678
    %v695 = vpack.c.b16 %v679, %v679
    %v696 = vpack.c.b16 %v680, %v680
    %v697 = vpack.c.b16 %v681, %v681
    %v698 = vpack.c.b16 %v682, %v682
    %v699 = vpack.c.b16 %v683, %v683
    %v700 = vpack.c.b16 %v684, %v684
    %717 = vst [vmem:[%s5] sm:$0xf] %v685
    %718 = vst [vmem:[%s5 + $0x4] sm:$0xf] %v686
    %719 = vst [vmem:[%s5 + $0x8] sm:$0xf] %v687
    %720 = vst [vmem:[%s5 + $0xc] sm:$0xf] %v688
    %721 = vst [vmem:[%s5 + $0x10] sm:$0xf] %v689
    %722 = vst [vmem:[%s5 + $0x14] sm:$0xf] %v690
    %723 = vst [vmem:[%s5 + $0x18] sm:$0xf] %v691
    %724 = vst [vmem:[%s5 + $0x1c] sm:$0xf] %v692
    %725 = vst [vmem:[%s5 + $0x20] sm:$0xf] %v693
    %726 = vst [vmem:[%s5 + $0x24] sm:$0xf] %v694
    %727 = vst [vmem:[%s5 + $0x28] sm:$0xf] %v695
    %728 = vst [vmem:[%s5 + $0x2c] sm:$0xf] %v696
    %729 = vst [vmem:[%s5 + $0x30] sm:$0xf] %v697
    %730 = vst [vmem:[%s5 + $0x34] sm:$0xf] %v698
    %731 = vst [vmem:[%s5 + $0x38] sm:$0xf] %v699
    %732 = vst [vmem:[%s5 + $0x3c] sm:$0xf] %v700
  $region29: #{sage_dgl_forward.5} parent=0 // pred_fallthru
    _
  // Predicated region
  $region30: #{sage_dgl_forward.5} parent=0 // pred_check
    _
  $region31: #{sage_dgl_forward.5} parent=0 // pred_check_branch
    %734 = sbr.rel (0) target = $region33
  $region32: #{sage_dgl_forward.5} parent=0 // pred_region
    _
  $region33: #{sage_dgl_forward.5} parent=0 // pred_fallthru
    _
  // Predicated region
  $region34: #{sage_dgl_forward.5} parent=0 // pred_check
    _
  $region35: #{sage_dgl_forward.5} parent=0 // pred_check_branch
    %736 = sbr.rel (0) target = $region37
  $region36: #{sage_dgl_forward.5} parent=0 // pred_region
    _
  $region37: #{sage_dgl_forward.5} parent=0 // pred_fallthru
    _

</llo_original>
